<compile_context>
chip_gen: v6e
topology: v6e:2x2x1
jax: 0.10.0
libtpu: 0.0.40
codegen_flags: <defaults>
</compile_context>

<pallas_src>
import itertools
from functools import partial

import numpy as np
import jax
import jax.numpy as jnp
from jax.experimental import pallas as pl
from jax.experimental.pallas import tpu as pltpu


def _round_up(x, m):
    return ((x + m - 1) // m) * m


def _vmem_capacity_bytes():
    """Per-core VMEM capacity; falls back to the smallest generation (v7x)."""
    try:
        info = pltpu.get_tpu_info()
        cap = int(getattr(info, "vmem_capacity_bytes", 0) or 0)
        if cap > 0:
            return cap
    except Exception:
        pass
    return 64 * 2 ** 20


def _antecedents_kernel(m_ref, rowidx_ref, o_ref, *, n_vars, s_total, tr,
                        and_op, compute_dtype):
    # m_ref:      (tn, S_total)   concatenated membership values tile
    # rowidx_ref: (n_vars, tr)    row (in 0..S_total-1) selected by each rule
    #                             column for each variable; -1 -> padded column
    # o_ref:      (tn, tr)        rule activation weights tile
    m = m_ref[...]
    row_iota = jax.lax.broadcasted_iota(jnp.int32, (s_total, tr), 0)

    def gathered(v):
        # One-hot gather matrix built in-kernel (no HBM traffic for it); the
        # gather itself runs on the MXU as a (tn, S) x (S, tr) matmul.
        onehot = (row_iota == rowidx_ref[v][None, :]).astype(compute_dtype)
        return jnp.dot(m, onehot, preferred_element_type=jnp.float32)

    acc = gathered(0)
    for v in range(1, n_vars):
        g = gathered(v)
        acc = acc * g if and_op == "prod" else jnp.minimum(acc, g)
    o_ref[...] = acc.astype(o_ref.dtype)


class AntecedentsPallas:
    """JAX/Pallas equivalent of the PyTorch Antecedents module."""

    _TN_MAX = 2048             # max batch tile (rows)
    _TR_MAX = 1024             # max rule tile (lanes), multiple of 128

    def __init__(self, n_sets, and_operator="prod", mean_rule_activation=False,
                 compute_dtype=jnp.float32, out_dtype=jnp.float32):
        assert and_operator in ("prod", "min")
        self.n_sets = [int(n) for n in n_sets]
        self.n_vars = len(self.n_sets)
        self.n_rules = int(np.prod(self.n_sets))
        self.and_operator = and_operator
        self.combinations = list(itertools.product(*[range(i) for i in self.n_sets]))
        self.mean_rule_activation = []
        self.bool = mean_rule_activation
        self.compute_dtype = jnp.dtype(compute_dtype)
        self.out_dtype = jnp.dtype(out_dtype)

        self.s_total = int(sum(self.n_sets))
        offsets = np.concatenate([[0], np.cumsum(self.n_sets)[:-1]]).astype(np.int64)

        # Rule tiling: lane-dense (multiple of 128) output columns.
        self.tr = int(min(self._TR_MAX, _round_up(self.n_rules, 128)))
        self.r_pad = _round_up(self.n_rules, self.tr)
        self.r_blocks = self.r_pad // self.tr

        # rowidx[v, r] = row of the concatenated membership matrix selected by
        # rule r for variable v; padded rules get -1 (never matches -> zeros,
        # and those output columns are masked away by the ragged block write).
        combos = np.asarray(self.combinations, dtype=np.int64)        # (R, n_vars)
        rowidx = np.full((self.n_vars, self.r_pad), -1, dtype=np.int32)
        for v in range(self.n_vars):
            rowidx[v, :self.n_rules] = offsets[v] + combos[:, v]
        self.rowidx = jnp.asarray(rowidx)

        cap = _vmem_capacity_bytes()
        self._vmem_cap = cap
        self._vmem_budget = (cap * 3) // 4   # tiles must fit in ~75% of VMEM

    # ---------------------------------------------------------------- tiling
    def _vmem_estimate(self, tn):
        cb = self.compute_dtype.itemsize
        ob = self.out_dtype.itemsize
        return (2 * tn * self.s_total * cb            # m tile (double-buffered)
                + 2 * self.n_vars * self.tr * 4       # rowidx tile (double-buffered)
                + 2 * tn * self.tr * ob               # out tile (double-buffered)
                + 2 * tn * self.tr * 4                # f32 acc + per-var dot result
                + 2 * self.s_total * self.tr * cb)    # in-kernel one-hot temporaries

    def _choose_tn(self, n):
        align = 16 if self.compute_dtype.itemsize == 2 else 8
        tn = int(min(self._TN_MAX, _round_up(max(n, 1), align)))
        while tn > align and self._vmem_estimate(tn) > self._vmem_budget:
            tn = max(align, _round_up(tn // 2, align))
        # Keep >= 2 grid steps on a parallel axis so both v7x TensorCores get work.
        if self.r_blocks == 1 and n > align and pl.cdiv(n, tn) < 2:
            tn = max(align, _round_up(pl.cdiv(n, 2), align))
        return tn

    # --------------------------------------------------------------- forward
    def __call__(self, memberships):
        # memberships: list of (N, n_sets[v]) float arrays.
        n = int(memberships[0].shape[0])
        m = jnp.concatenate(
            [mem.astype(self.compute_dtype) for mem in memberships], axis=1
        )  # (N, S_total)

        tn = self._choose_tn(n)
        kernel = partial(_antecedents_kernel, n_vars=self.n_vars,
                         s_total=self.s_total, tr=self.tr,
                         and_op=self.and_operator,
                         compute_dtype=self.compute_dtype)

        vmem_limit = int(min(self._vmem_cap - (8 << 20),
                             max(2 * self._vmem_estimate(tn), 32 << 20)))

        antecedents = pl.pallas_call(
            kernel,
            out_shape=jax.ShapeDtypeStruct((n, self.n_rules), self.out_dtype),
            grid_spec=pltpu.PrefetchScalarGridSpec(
                num_scalar_prefetch=0,
                grid=(pl.cdiv(n, tn), self.r_blocks),
                in_specs=[
                    pl.BlockSpec((tn, self.s_total), lambda i, j: (i, 0)),
                    pl.BlockSpec((self.n_vars, self.tr), lambda i, j: (0, j)),
                ],
                out_specs=pl.BlockSpec((tn, self.tr), lambda i, j: (i, j)),
            ),
            compiler_params=pltpu.CompilerParams(
                dimension_semantics=("parallel", "parallel"),
                vmem_limit_bytes=vmem_limit,
            ),
        )(m, self.rowidx)

        if self.bool:
            # TODO(synk): host-side Python-list side effect (mirrors the
            # torch.no_grad() branch); it will not update under jax.jit.
            self.mean_rule_activation.append(jnp.mean(antecedents, axis=0))
        return antecedents


def _reference(memberships, combinations, and_operator):
    combos = np.asarray(combinations)                        # (R, n_vars)
    gathered = jnp.stack(
        [memberships[v][:, combos[:, v]] for v in range(combos.shape[1])], axis=-1
    )                                                        # (N, R, n_vars)
    if and_operator == "prod":
        return jnp.prod(gathered, axis=-1)
    return jnp.min(gathered, axis=-1)


if __name__ == "__main__":
    # Config 1: 3 variables -> R = 24 rules; ragged batch exercises row masking.
    n_sets = [3, 2, 4]
    N = 10
    keys = jax.random.split(jax.random.PRNGKey(0), len(n_sets))
    memberships = [jax.nn.softmax(jax.random.normal(k, (N, n)), axis=-1)
                   for k, n in zip(keys, n_sets)]

    layer = AntecedentsPallas(n_sets, and_operator="prod", mean_rule_activation=True)
    out = jax.block_until_ready(layer(memberships))
    ref = _reference(memberships, layer.combinations, "prod")
    assert out.shape == (N, layer.n_rules)
    assert jnp.allclose(out, ref, atol=1e-5, rtol=1e-5)
    assert len(layer.mean_rule_activation) == 1

    # min-AND variant.
    layer_min = AntecedentsPallas(n_sets, and_operator="min")
    out_min = jax.block_until_ready(layer_min(memberships))
    ref_min = _reference(memberships, layer_min.combinations, "min")
    assert jnp.allclose(out_min, ref_min, atol=1e-5, rtol=1e-5)

    # Optional bf16 fast path (bf16 compute + bf16 output -> looser tolerance).
    layer_bf16 = AntecedentsPallas(n_sets, and_operator="prod",
                                   compute_dtype=jnp.bfloat16,
                                   out_dtype=jnp.bfloat16)
    out_bf16 = jax.block_until_ready(layer_bf16(memberships))
    assert jnp.allclose(out_bf16.astype(jnp.float32), ref, atol=2e-2, rtol=2e-2)

    # Config 2: 4 variables -> R = 1296 rules (> one 1024-lane rule block):
    # exercises the rule-block grid axis and masking of the ragged last block.
    n_sets2 = [6, 6, 6, 6]
    N2 = 16
    keys2 = jax.random.split(jax.random.PRNGKey(1), len(n_sets2))
    memberships2 = [jax.nn.softmax(jax.random.normal(k, (N2, n)), axis=-1)
                    for k, n in zip(keys2, n_sets2)]
    layer2 = AntecedentsPallas(n_sets2, and_operator="prod")
    out2 = jax.block_until_ready(layer2(memberships2))
    ref2 = _reference(memberships2, layer2.combinations, "prod")
    assert out2.shape == (N2, layer2.n_rules)
    assert jnp.allclose(out2, ref2, atol=1e-5, rtol=1e-5)

    print("KERNEL_OK")
</pallas_src>

<mosaic_0001>
module attributes {stable_mosaic.version = 11 : i64} {
  func.func @_antecedents_kernel(%arg0: i32, %arg1: i32, %arg2: memref<8x9xf32, #tpu.memory_space<vmem>>, %arg3: memref<3x128xi32, #tpu.memory_space<vmem>>, %arg4: memref<8x128xf32, #tpu.memory_space<vmem>>) attributes {dimension_semantics = [#tpu.dimension_semantics<parallel>, #tpu.dimension_semantics<parallel>], iteration_bounds = array<i64: 2, 1>, scalar_prefetch = 0 : i64, scratch_operands = 0 : i64, tpu.core_type = #tpu.core_type<tc>, window_params = [{transform_indices = @transform_0, window_bounds = array<i64: 8, 9>}, {transform_indices = @transform_1, window_bounds = array<i64: 3, 128>}, {transform_indices = @transform_2, window_bounds = array<i64: 8, 128>}]} {
    %c0 = arith.constant 0 : index
    %c0_0 = arith.constant 0 : index
    %0 = vector.load %arg2[%c0, %c0_0] : memref<8x9xf32, #tpu.memory_space<vmem>>, vector<8x9xf32>
    %1 = tpu.iota {dimensions = array<i32: 0>} : vector<9x128xi32>
    %c0_1 = arith.constant 0 : index
    %c0_2 = arith.constant 0 : index
    %2 = vector.load %arg3[%c0_1, %c0_2] : memref<3x128xi32, #tpu.memory_space<vmem>>, vector<1x128xi32>
    %3 = vector.shape_cast %2 : vector<1x128xi32> to vector<128xi32>
    %4 = vector.shape_cast %3 : vector<128xi32> to vector<1x128xi32>
    %5 = vector.broadcast %4 : vector<1x128xi32> to vector<9x128xi32>
    %6 = arith.cmpi eq, %1, %5 : vector<9x128xi32>
    %7 = arith.extui %6 : vector<9x128xi1> to vector<9x128xi32>
    %8 = arith.sitofp %7 : vector<9x128xi32> to vector<9x128xf32>
    %cst = arith.constant dense<0.000000e+00> : vector<8x128xf32>
    %9 = tpu.matmul %0, %8, %cst {dimension_numbers = #tpu.dot_dimension_numbers<[1], [0], [0], [1], [0, 0, 1, 1], [], []>} : vector<8x9xf32>, vector<9x128xf32>, vector<8x128xf32> -> vector<8x128xf32>
    %c1 = arith.constant 1 : index
    %c0_3 = arith.constant 0 : index
    %10 = vector.load %arg3[%c1, %c0_3] : memref<3x128xi32, #tpu.memory_space<vmem>>, vector<1x128xi32>
    %11 = vector.shape_cast %10 : vector<1x128xi32> to vector<128xi32>
    %12 = vector.shape_cast %11 : vector<128xi32> to vector<1x128xi32>
    %13 = vector.broadcast %12 : vector<1x128xi32> to vector<9x128xi32>
    %14 = arith.cmpi eq, %1, %13 : vector<9x128xi32>
    %15 = arith.extui %14 : vector<9x128xi1> to vector<9x128xi32>
    %16 = arith.sitofp %15 : vector<9x128xi32> to vector<9x128xf32>
    %cst_4 = arith.constant dense<0.000000e+00> : vector<8x128xf32>
    %17 = tpu.matmul %0, %16, %cst_4 {dimension_numbers = #tpu.dot_dimension_numbers<[1], [0], [0], [1], [0, 0, 1, 1], [], []>} : vector<8x9xf32>, vector<9x128xf32>, vector<8x128xf32> -> vector<8x128xf32>
    %18 = arith.mulf %9, %17 : vector<8x128xf32>
    %c2 = arith.constant 2 : index
    %c0_5 = arith.constant 0 : index
    %19 = vector.load %arg3[%c2, %c0_5] : memref<3x128xi32, #tpu.memory_space<vmem>>, vector<1x128xi32>
    %20 = vector.shape_cast %19 : vector<1x128xi32> to vector<128xi32>
    %21 = vector.shape_cast %20 : vector<128xi32> to vector<1x128xi32>
    %22 = vector.broadcast %21 : vector<1x128xi32> to vector<9x128xi32>
    %23 = arith.cmpi eq, %1, %22 : vector<9x128xi32>
    %24 = arith.extui %23 : vector<9x128xi1> to vector<9x128xi32>
    %25 = arith.sitofp %24 : vector<9x128xi32> to vector<9x128xf32>
    %cst_6 = arith.constant dense<0.000000e+00> : vector<8x128xf32>
    %26 = tpu.matmul %0, %25, %cst_6 {dimension_numbers = #tpu.dot_dimension_numbers<[1], [0], [0], [1], [0, 0, 1, 1], [], []>} : vector<8x9xf32>, vector<9x128xf32>, vector<8x128xf32> -> vector<8x128xf32>
    %27 = arith.mulf %18, %26 : vector<8x128xf32>
    %c0_7 = arith.constant 0 : index
    %c0_8 = arith.constant 0 : index
    %28 = vector.load %arg4[%c0_7, %c0_8] : memref<8x128xf32, #tpu.memory_space<vmem>>, vector<8x128xf32>
    tpu.vector_store %arg4[%c0_7, %c0_8], %27 {strides = array<i32>} : memref<8x128xf32, #tpu.memory_space<vmem>>, vector<8x128xf32>,
    return
  }
  func.func @transform_0(%arg0: i32, %arg1: i32) -> (i32, i32) {
    %c0_i32 = arith.constant 0 : i32
    %c0_i32_0 = arith.constant 0 : i32
    return %arg0, %c0_i32 : i32, i32
  }
  func.func @transform_1(%arg0: i32, %arg1: i32) -> (i32, i32) {
    %c0_i32 = arith.constant 0 : i32
    %c0_i32_0 = arith.constant 0 : i32
    return %c0_i32, %arg1 : i32, i32
  }
  func.func @transform_2(%arg0: i32, %arg1: i32) -> (i32, i32) {
    %c0_i32 = arith.constant 0 : i32
    return %arg0, %arg1 : i32, i32
  }
}

</mosaic_0001>

<llo_original>
// kernel: tpu_custom_call.1
$region0: #{tpu_custom_call.1}
  #allocation0 [shape = 'u32[]', space=smem, size = 0x4, offset = 0x4, fixed_abs, tag = 'smem constant byte address 0x4 - core index']
  #allocation1 [shape = 'u32[144,128]{1,0:T(1,128)}', space=vmem, size = 0x12000, scoped, tag = 'internal scratch']
  %s0 = inlined_call_operand.hbm [shape: f32[10,9], index: 0, kind: input, shape index: {}]
  %s1 = inlined_call_operand.hbm [shape: s32[3,128], index: 1, kind: input, shape index: {}]
  %s2 = inlined_call_operand.hbm [shape: f32[10,24], index: 2, kind: output, shape index: {}]
  %s3 = sld [smem:[#allocation0]]
  $region49: #{tpu_custom_call.1} parent=0
    _
  %s5 = ssub.s32 1, %s3
  %s6 = scalar_select 0, %s5, %s3
  $region1: #{tpu_custom_call.1} parent=0
    #allocation2 [shape = 'u8[8192]{0}', space=vmem, size = 0x2000, scoped, tag = 'input window, operand 0']
    #allocation3 [shape = 's32[2]{0}', space=sflag, size = 0x8, scoped, tag = 'scoped memory for tpu_custom_call.1']
    #allocation4 [shape = 's32[2]{0}', space=sflag, size = 0x8, scoped, tag = 'scoped memory for tpu_custom_call.1']
    #allocation5 [shape = 'u8[2048]{0}', space=vmem, size = 0x800, scoped, tag = 'input window, operand 1, single buffered']
    #allocation6 [shape = 's32[1]{0}', space=sflag, size = 0x4, scoped, tag = 'scoped memory for tpu_custom_call.1']
    #allocation7 [shape = 'u8[8192]{0}', space=vmem, size = 0x2000, scoped, tag = 'output window, operand 0']
    %7 = vsyncpa [#allocation3], 0
    %s8 = scalar_lea.sflag [#allocation3], 1
    %9 = vsyncpa %s8, 0
    %10 = vsyncpa [#allocation6], 0
    %11 = vsyncpa [#allocation4], 0
    %s12 = scalar_lea.sflag [#allocation4], 1
    %13 = vsyncpa %s12, 0
    loop: start=0, step=1, limit=4
    $region2: #{tpu_custom_call.1} parent=1 // loop_pre_header
      _
    $region3: #{tpu_custom_call.1} parent=1 // loop_header
      %s15 = sphi 0, %s19
      %p16 = scmp.ge.s32.totalorder %s15, 4
      %s22 = sphi 0, %s34
      %s23 = sphi 0, %s30
      %s24 = sphi 0, %s22
      %s25 = sphi 0, %s23
      %s26 = sphi 0, %s24
      %s27 = sphi 0, %s25
      %s37 = sphi 0, %s39
      %s40 = sphi 0, %s37
      %s41 = sphi 0, %s40
      %s57 = sphi 0, %s41
      %s63 = sphi 0, %s65
      %s66 = sphi 0, %s63
      %s67 = sphi 0, %s66
      %s83 = sphi 0, %s67
      %s91 = sphi 0, %s93
      %s94 = sphi 0, %s91
      %s95 = sphi 0, %s94
      %s111 = sphi 0, %s95
    $region4: #{tpu_custom_call.1} parent=1 // loop_header_branch
      %18 = sbr.rel (%p16) target = $region8
    $region5: #{tpu_custom_call.1} parent=1 // loop_body
      %s20 = ssub.s32 %s15, 1
      %s21 = ssub.s32 %s15, 2
      %s28 = sadd.s32 1, %s23
      %p29 = scmp.ge.s32.totalorder %s28, 1
      %s30 = scalar_select %p29, 0, %s28
      %s31 = sadd.s32 1, %s22
      %s32 = scalar_select %p29, %s31, %s22
      %p33 = scmp.ge.s32.totalorder %s32, 2
      %s34 = scalar_select %p33, 0, %s32
      %s35 = ssub.s32 %s22, %s34
      %p36 = scmp.eq.s32.totalorder %s35, 0
      %s38 = sadd.s32 %s37, 1
      %s39 = scalar_select %p36, %s37, %s38
      %p42 = pneg %p36
      %p43 = scmp.eq.s32.totalorder %s15, 1
      %p44 = por %p42, %p43
      %p45 = scmp.ne.s32.totalorder %s37, %s40
      %p46 = scmp.eq.s32.totalorder %s15, 0
      %p47 = por %p45, %p46
      %p48 = scmp.ne.s32.totalorder %s37, %s40
      %p49 = scmp.eq.s32.totalorder %s20, 1
      %p50 = por %p48, %p49
      %p51 = scmp.ne.s32.totalorder %s40, %s41
      %p52 = scmp.eq.s32.totalorder %s20, 0
      %p53 = por %p51, %p52
      %p54 = scmp.ne.s32.totalorder %s40, %s41
      %p55 = scmp.eq.s32.totalorder %s21, 1
      %p56 = por %p54, %p55
      %p58 = scmp.ne.s32.totalorder %s41, %s57
      %p59 = scmp.eq.s32.totalorder %s21, 0
      %p60 = por %p58, %p59
      %s61 = ssub.s32 %s23, %s30
      %p62 = scmp.eq.s32.totalorder %s61, 0
      %s64 = sadd.s32 %s63, 1
      %s65 = scalar_select %p62, %s63, %s64
      %p68 = pneg %p62
      %p69 = scmp.eq.s32.totalorder %s15, 1
      %p70 = por %p68, %p69
      %p71 = scmp.ne.s32.totalorder %s63, %s66
      %p72 = scmp.eq.s32.totalorder %s15, 0
      %p73 = por %p71, %p72
      %p74 = scmp.ne.s32.totalorder %s63, %s66
      %p75 = scmp.eq.s32.totalorder %s20, 1
      %p76 = por %p74, %p75
      %p77 = scmp.ne.s32.totalorder %s66, %s67
      %p78 = scmp.eq.s32.totalorder %s20, 0
      %p79 = por %p77, %p78
      %p80 = scmp.ne.s32.totalorder %s66, %s67
      %p81 = scmp.eq.s32.totalorder %s21, 1
      %p82 = por %p80, %p81
      %p84 = scmp.ne.s32.totalorder %s67, %s83
      %p85 = scmp.eq.s32.totalorder %s21, 0
      %p86 = por %p84, %p85
      %s87 = ssub.s32 %s22, %s34
      %s88 = ssub.s32 %s23, %s30
      %s89 = sor.u32 %s87, %s88
      %p90 = scmp.eq.s32.totalorder %s89, 0
      %s92 = sadd.s32 %s91, 1
      %s93 = scalar_select %p90, %s91, %s92
      %p96 = pneg %p90
      %p97 = scmp.eq.s32.totalorder %s15, 1
      %p98 = por %p96, %p97
      %p99 = scmp.ne.s32.totalorder %s91, %s94
      %p100 = scmp.eq.s32.totalorder %s15, 0
      %p101 = por %p99, %p100
      %p102 = scmp.ne.s32.totalorder %s91, %s94
      %p103 = scmp.eq.s32.totalorder %s20, 1
      %p104 = por %p102, %p103
      %p105 = scmp.ne.s32.totalorder %s94, %s95
      %p106 = scmp.eq.s32.totalorder %s20, 0
      %p107 = por %p105, %p106
      %p108 = scmp.ne.s32.totalorder %s94, %s95
      %p109 = scmp.eq.s32.totalorder %s21, 1
      %p110 = por %p108, %p109
      %p112 = scmp.ne.s32.totalorder %s95, %s111
      %p113 = scmp.eq.s32.totalorder %s21, 0
      %p114 = por %p112, %p113
      %p115 = scmp.le.s32.totalorder 1, %s15
      %p116 = scmp.lt.s32.totalorder %s15, 3
      %p117 = pnand %p115, %p116
      %p118 = pneg %p117
      // Predicated region
      $region9: #{tpu_custom_call.1} parent=5 // pred_check
        _
      $region10: #{tpu_custom_call.1} parent=5 // pred_check_branch
        %120 = sbr.rel (%p117) target = $region12
      $region11: #{tpu_custom_call.1} parent=5 // pred_region
        %s121 = ssub.s32 %s15, 1
        // Predicated region
        $region13: #{tpu_custom_call.1} parent=11 // pred_check
          %p122 = pneg %p79
        $region14: #{tpu_custom_call.1} parent=11 // pred_check_branch
          %124 = sbr.rel (%p122) target = $region16
        $region15: #{tpu_custom_call.1} parent=11 // pred_region
          %s126 = ssub.s32 64, 64
          %127 = vsyncadd [#allocation6], %s126
          %s128 = smul.addr %s25, 64
          %s129 = scalar_lea.hbm %s1, %s128
          %s131 = sshll.u32 [#allocation5], 4
          %s132 = int_to_ptr.vmem [resolvable:$true] %s131
          %134 = dma.hbm_to_vmem [thread:$0]  %s129, 64, %s132, [#allocation6]
        $region16: #{tpu_custom_call.1} parent=11 // pred_fallthru
          _
      $region12: #{tpu_custom_call.1} parent=5 // pred_fallthru
        _
      %p135 = scmp.lt.s32.totalorder %s15, 2
      // Predicated region
      $region17: #{tpu_custom_call.1} parent=5 // pred_check
        %p136 = pneg %p135
      $region18: #{tpu_custom_call.1} parent=5 // pred_check_branch
        %138 = sbr.rel (%p136) target = $region20
      $region19: #{tpu_custom_call.1} parent=5 // pred_region
        // Predicated region
        $region21: #{tpu_custom_call.1} parent=19 // pred_check
          %p139 = pneg %p47
        $region22: #{tpu_custom_call.1} parent=19 // pred_check_branch
          %141 = sbr.rel (%p139) target = $region24
        $region23: #{tpu_custom_call.1} parent=19 // pred_region
          %s142 = sand.u32 %s37, 1
          %s143 = scalar_lea.sflag [#allocation3], %s142
          %s144 = sand.u32 %s37, 1
          %s145 = smul.addr %s144, 8
          %s146 = scalar_lea.vmem [#allocation2], %s145
          %s148 = ssub.s32 128, 128
          %149 = vsyncadd %s143, %s148
          %s150 = smul.addr %s22, 128
          %s151 = scalar_lea.hbm %s0, %s150
          %s153 = sshll.u32 %s146, 4
          %s154 = int_to_ptr.vmem [resolvable:$true] %s153
          %156 = dma.hbm_to_vmem [thread:$0]  %s151, 128, %s154, %s143
        $region24: #{tpu_custom_call.1} parent=19 // pred_fallthru
          _
      $region20: #{tpu_custom_call.1} parent=5 // pred_fallthru
        _
      %p157 = scmp.le.s32.totalorder 1, %s15
      %p158 = scmp.lt.s32.totalorder %s15, 3
      %p159 = pnand %p157, %p158
      %p160 = pneg %p159
      // Predicated region
      $region25: #{tpu_custom_call.1} parent=5 // pred_check
        _
      $region26: #{tpu_custom_call.1} parent=5 // pred_check_branch
        %162 = sbr.rel (%p159) target = $region28
      $region27: #{tpu_custom_call.1} parent=5 // pred_region
        %s163 = ssub.s32 %s15, 1
        %s164 = sand.u32 %s40, 1
        %s165 = scalar_lea.sflag [#allocation3], %s164
        %s166 = sand.u32 %s40, 1
        %s167 = smul.addr %s166, 8
        %s168 = scalar_lea.vmem [#allocation2], %s167
        // Predicated region
        $region29: #{tpu_custom_call.1} parent=27 // pred_check
          %p169 = pneg %p53
        $region30: #{tpu_custom_call.1} parent=27 // pred_check_branch
          %171 = sbr.rel (%p169) target = $region32
        $region31: #{tpu_custom_call.1} parent=27 // pred_region
          %172 = dma.done %s165, 128
        $region32: #{tpu_custom_call.1} parent=27 // pred_fallthru
          _
        // Predicated region
        $region33: #{tpu_custom_call.1} parent=27 // pred_check
          %p173 = pneg %p79
        $region34: #{tpu_custom_call.1} parent=27 // pred_check_branch
          %175 = sbr.rel (%p173) target = $region36
        $region35: #{tpu_custom_call.1} parent=27 // pred_region
          %176 = dma.done [#allocation6], 64
        $region36: #{tpu_custom_call.1} parent=27 // pred_fallthru
          _
        %s177 = sand.u32 %s40, 1
        %s178 = scalar_lea.sflag [#allocation3], %s177
        %s179 = sand.u32 %s40, 1
        %s180 = smul.addr %s179, 8
        %s181 = scalar_lea.vmem [#allocation2], %s180
        %p182 = pneg %p53
        %p183 = pneg %p50
        %p184 = pneg %p79
        %p185 = pneg %p76
        %p186 = pneg %p107
        %p187 = pneg %p104
        %s188 = sand.u32 %s94, 1
        %s189 = scalar_lea.sflag [#allocation4], %s188
        %s190 = sand.u32 %s94, 1
        %s191 = smul.addr %s190, 8
        %s192 = scalar_lea.vmem [#allocation7], %s191
        %v193 = vld [vmem:[%s168] sm:$0xff]
        %v194 = vlaneseq
        %v195 = vshrl.u32 %v194, 7
        %v196 = vadd.s32 %v195, 8
        %v197 = vld [vmem:[#allocation5] sm:$0x1]
        %v198 = vlaneseq
        %v199 = vshrl.u32 %v198, 7
        %v200 = vsub.s32 0, %v199
        %v201 = vrot.slane %v197, %v200
        %vm202 = vcmp.eq.s32.totalorder %v195, %v201
        %vm203 = vcmp.eq.s32.totalorder %v196, %v201
        %v204 = vsel %vm202, 1, 0
        %v205 = vsel %vm203, 1, 0
        %v206 = vcvt.s32.f32 %v204
        %v207 = vcvt.s32.f32 %v205
        %vm208 = vcmask 72704
        %v210 = vsel %vm208, %v193, 0
        %vm212 = vcmask 1040384
        %v214 = vsel %vm212, %v207, 0
        %216 = vmatprep.subr.mxu0 0.0
        %217 = vmatpush1.msra.mxu0 0.0
        %218 = vmatprep.subr.mxu0 0.0
        %219 = vmatpush1.msra.mxu0 0.0
        %220 = vmatprep.subr.mxu0 0.0
        %221 = vmatpush1.msra.mxu0 0.0
        %222 = vmatprep.subr.mxu0 0.0
        %223 = vmatpush1.msra.mxu0 0.0
        %224 = vmatprep.subr.mxu0 0.0
        %225 = vmatpush1.msra.mxu0 0.0
        %226 = vmatprep.subr.mxu0 0.0
        %227 = vmatpush1.msra.mxu0 0.0
        %228 = vmatprep.subr.mxu0 0.0
        %229 = vmatpush1.msra.mxu0 0.0
        %230 = vmatprep.subr.mxu0 0.0
        %231 = vmatpush1.msra.mxu0 0.0
        %232 = vmatprep.subr.mxu0 0.0
        %233 = vmatpush1.msra.mxu0 0.0
        %234 = vmatprep.subr.mxu0 0.0
        %235 = vmatpush1.msra.mxu0 0.0
        %236 = vmatprep.subr.mxu0 0.0
        %237 = vmatpush1.msra.mxu0 0.0
        %238 = vmatprep.subr.mxu0 0.0
        %239 = vmatpush1.msra.mxu0 0.0
        %240 = vmatprep.subr.mxu0 0.0
        %241 = vmatpush1.msra.mxu0 0.0
        %242 = vmatprep.subr.mxu0 0.0
        %243 = vmatpush1.msra.mxu0 0.0
        %244 = vmatprep.subr.mxu0 0.0
        %245 = vmatpush1.msra.mxu0 %v214
        %246 = vmatprep.subr.mxu0 0.0
        %247 = vmatpush1.msra.mxu0 %v206
        %248 = vmatprep.subr.mxu0 0.0
        %249 = vmatpush2.msra.mxu0 0.0
        %250 = vmatprep.subr.mxu0 0.0
        %251 = vmatpush2.msra.mxu0 0.0
        %252 = vmatprep.subr.mxu0 0.0
        %253 = vmatpush2.msra.mxu0 0.0
        %254 = vmatprep.subr.mxu0 0.0
        %255 = vmatpush2.msra.mxu0 0.0
        %256 = vmatprep.subr.mxu0 0.0
        %257 = vmatpush2.msra.mxu0 0.0
        %258 = vmatprep.subr.mxu0 0.0
        %259 = vmatpush2.msra.mxu0 0.0
        %260 = vmatprep.subr.mxu0 0.0
        %261 = vmatpush2.msra.mxu0 0.0
        %262 = vmatprep.subr.mxu0 0.0
        %263 = vmatpush2.msra.mxu0 0.0
        %264 = vmatprep.subr.mxu0 0.0
        %265 = vmatpush2.msra.mxu0 0.0
        %266 = vmatprep.subr.mxu0 0.0
        %267 = vmatpush2.msra.mxu0 0.0
        %268 = vmatprep.subr.mxu0 0.0
        %269 = vmatpush2.msra.mxu0 0.0
        %270 = vmatprep.subr.mxu0 0.0
        %271 = vmatpush2.msra.mxu0 0.0
        %272 = vmatprep.subr.mxu0 0.0
        %273 = vmatpush2.msra.mxu0 0.0
        %274 = vmatprep.subr.mxu0 0.0
        %275 = vmatpush2.msra.mxu0 0.0
        %276 = vmatprep.subr.mxu0 0.0
        %277 = vmatpush2.msra.mxu0 0.0
        %278 = vmatprep.subr.mxu0 0.0
        %279 = vmatpush2.msra.mxu0 0.0
        %280 = vmatprep.mubr.f32.mxu0 0.0
        %281 = vmatmul.mubr.f32.gmra.mxu0 %v210
        %v282 = vpop.f32.mrf.mxu0
        %v283 = vadd.f32 0.0, %v282
        %v284 = vpop.f32.mrf.mxu0
        %285 = vdwg.mxu0
        %v286 = vld [vmem:[#allocation5 + $0x1] sm:$0x1]
        %v287 = vlaneseq
        %v288 = vshrl.u32 %v287, 7
        %v289 = vsub.s32 0, %v288
        %v290 = vrot.slane %v286, %v289
        %vm291 = vcmp.eq.s32.totalorder %v195, %v290
        %vm292 = vcmp.eq.s32.totalorder %v196, %v290
        %v293 = vsel %vm291, 1, 0
        %v294 = vsel %vm292, 1, 0
        %v295 = vcvt.s32.f32 %v293
        %v296 = vcvt.s32.f32 %v294
        %v298 = vsel %vm212, %v296, 0
        %300 = vmatprep.subr.mxu0 0.0
        %301 = vmatpush1.msra.mxu0 0.0
        %302 = vmatprep.subr.mxu0 0.0
        %303 = vmatpush1.msra.mxu0 0.0
        %304 = vmatprep.subr.mxu0 0.0
        %305 = vmatpush1.msra.mxu0 0.0
        %306 = vmatprep.subr.mxu0 0.0
        %307 = vmatpush1.msra.mxu0 0.0
        %308 = vmatprep.subr.mxu0 0.0
        %309 = vmatpush1.msra.mxu0 0.0
        %310 = vmatprep.subr.mxu0 0.0
        %311 = vmatpush1.msra.mxu0 0.0
        %312 = vmatprep.subr.mxu0 0.0
        %313 = vmatpush1.msra.mxu0 0.0
        %314 = vmatprep.subr.mxu0 0.0
        %315 = vmatpush1.msra.mxu0 0.0
        %316 = vmatprep.subr.mxu0 0.0
        %317 = vmatpush1.msra.mxu0 0.0
        %318 = vmatprep.subr.mxu0 0.0
        %319 = vmatpush1.msra.mxu0 0.0
        %320 = vmatprep.subr.mxu0 0.0
        %321 = vmatpush1.msra.mxu0 0.0
        %322 = vmatprep.subr.mxu0 0.0
        %323 = vmatpush1.msra.mxu0 0.0
        %324 = vmatprep.subr.mxu0 0.0
        %325 = vmatpush1.msra.mxu0 0.0
        %326 = vmatprep.subr.mxu0 0.0
        %327 = vmatpush1.msra.mxu0 0.0
        %328 = vmatprep.subr.mxu0 0.0
        %329 = vmatpush1.msra.mxu0 %v298
        %330 = vmatprep.subr.mxu0 0.0
        %331 = vmatpush1.msra.mxu0 %v295
        %332 = vmatprep.subr.mxu0 0.0
        %333 = vmatpush2.msra.mxu0 0.0
        %334 = vmatprep.subr.mxu0 0.0
        %335 = vmatpush2.msra.mxu0 0.0
        %336 = vmatprep.subr.mxu0 0.0
        %337 = vmatpush2.msra.mxu0 0.0
        %338 = vmatprep.subr.mxu0 0.0
        %339 = vmatpush2.msra.mxu0 0.0
        %340 = vmatprep.subr.mxu0 0.0
        %341 = vmatpush2.msra.mxu0 0.0
        %342 = vmatprep.subr.mxu0 0.0
        %343 = vmatpush2.msra.mxu0 0.0
        %344 = vmatprep.subr.mxu0 0.0
        %345 = vmatpush2.msra.mxu0 0.0
        %346 = vmatprep.subr.mxu0 0.0
        %347 = vmatpush2.msra.mxu0 0.0
        %348 = vmatprep.subr.mxu0 0.0
        %349 = vmatpush2.msra.mxu0 0.0
        %350 = vmatprep.subr.mxu0 0.0
        %351 = vmatpush2.msra.mxu0 0.0
        %352 = vmatprep.subr.mxu0 0.0
        %353 = vmatpush2.msra.mxu0 0.0
        %354 = vmatprep.subr.mxu0 0.0
        %355 = vmatpush2.msra.mxu0 0.0
        %356 = vmatprep.subr.mxu0 0.0
        %357 = vmatpush2.msra.mxu0 0.0
        %358 = vmatprep.subr.mxu0 0.0
        %359 = vmatpush2.msra.mxu0 0.0
        %360 = vmatprep.subr.mxu0 0.0
        %361 = vmatpush2.msra.mxu0 0.0
        %362 = vmatprep.subr.mxu0 0.0
        %363 = vmatpush2.msra.mxu0 0.0
        %364 = vmatprep.mubr.f32.mxu0 0.0
        %365 = vmatmul.mubr.f32.gmra.mxu0 %v210
        %v366 = vpop.f32.mrf.mxu0
        %v367 = vadd.f32 0.0, %v366
        %v368 = vpop.f32.mrf.mxu0
        %369 = vdwg.mxu0
        %v370 = vmul.f32 %v283, %v367
        %v371 = vld [vmem:[#allocation5 + $0x2] sm:$0x1]
        %v372 = vlaneseq
        %v373 = vshrl.u32 %v372, 7
        %v374 = vsub.s32 0, %v373
        %v375 = vrot.slane %v371, %v374
        %vm376 = vcmp.eq.s32.totalorder %v195, %v375
        %vm377 = vcmp.eq.s32.totalorder %v196, %v375
        %v378 = vsel %vm376, 1, 0
        %v379 = vsel %vm377, 1, 0
        %v380 = vcvt.s32.f32 %v378
        %v381 = vcvt.s32.f32 %v379
        %v383 = vsel %vm212, %v381, 0
        %385 = vmatprep.subr.mxu0 0.0
        %386 = vmatpush1.msra.mxu0 0.0
        %387 = vmatprep.subr.mxu0 0.0
        %388 = vmatpush1.msra.mxu0 0.0
        %389 = vmatprep.subr.mxu0 0.0
        %390 = vmatpush1.msra.mxu0 0.0
        %391 = vmatprep.subr.mxu0 0.0
        %392 = vmatpush1.msra.mxu0 0.0
        %393 = vmatprep.subr.mxu0 0.0
        %394 = vmatpush1.msra.mxu0 0.0
        %395 = vmatprep.subr.mxu0 0.0
        %396 = vmatpush1.msra.mxu0 0.0
        %397 = vmatprep.subr.mxu0 0.0
        %398 = vmatpush1.msra.mxu0 0.0
        %399 = vmatprep.subr.mxu0 0.0
        %400 = vmatpush1.msra.mxu0 0.0
        %401 = vmatprep.subr.mxu0 0.0
        %402 = vmatpush1.msra.mxu0 0.0
        %403 = vmatprep.subr.mxu0 0.0
        %404 = vmatpush1.msra.mxu0 0.0
        %405 = vmatprep.subr.mxu0 0.0
        %406 = vmatpush1.msra.mxu0 0.0
        %407 = vmatprep.subr.mxu0 0.0
        %408 = vmatpush1.msra.mxu0 0.0
        %409 = vmatprep.subr.mxu0 0.0
        %410 = vmatpush1.msra.mxu0 0.0
        %411 = vmatprep.subr.mxu0 0.0
        %412 = vmatpush1.msra.mxu0 0.0
        %413 = vmatprep.subr.mxu0 0.0
        %414 = vmatpush1.msra.mxu0 %v383
        %415 = vmatprep.subr.mxu0 0.0
        %416 = vmatpush1.msra.mxu0 %v380
        %417 = vmatprep.subr.mxu0 0.0
        %418 = vmatpush2.msra.mxu0 0.0
        %419 = vmatprep.subr.mxu0 0.0
        %420 = vmatpush2.msra.mxu0 0.0
        %421 = vmatprep.subr.mxu0 0.0
        %422 = vmatpush2.msra.mxu0 0.0
        %423 = vmatprep.subr.mxu0 0.0
        %424 = vmatpush2.msra.mxu0 0.0
        %425 = vmatprep.subr.mxu0 0.0
        %426 = vmatpush2.msra.mxu0 0.0
        %427 = vmatprep.subr.mxu0 0.0
        %428 = vmatpush2.msra.mxu0 0.0
        %429 = vmatprep.subr.mxu0 0.0
        %430 = vmatpush2.msra.mxu0 0.0
        %431 = vmatprep.subr.mxu0 0.0
        %432 = vmatpush2.msra.mxu0 0.0
        %433 = vmatprep.subr.mxu0 0.0
        %434 = vmatpush2.msra.mxu0 0.0
        %435 = vmatprep.subr.mxu0 0.0
        %436 = vmatpush2.msra.mxu0 0.0
        %437 = vmatprep.subr.mxu0 0.0
        %438 = vmatpush2.msra.mxu0 0.0
        %439 = vmatprep.subr.mxu0 0.0
        %440 = vmatpush2.msra.mxu0 0.0
        %441 = vmatprep.subr.mxu0 0.0
        %442 = vmatpush2.msra.mxu0 0.0
        %443 = vmatprep.subr.mxu0 0.0
        %444 = vmatpush2.msra.mxu0 0.0
        %445 = vmatprep.subr.mxu0 0.0
        %446 = vmatpush2.msra.mxu0 0.0
        %447 = vmatprep.subr.mxu0 0.0
        %448 = vmatpush2.msra.mxu0 0.0
        %449 = vmatprep.mubr.f32.mxu0 0.0
        %450 = vmatmul.mubr.f32.gmra.mxu0 %v210
        %v451 = vpop.f32.mrf.mxu0
        %v452 = vadd.f32 0.0, %v451
        %v453 = vpop.f32.mrf.mxu0
        %454 = vdwg.mxu0
        %v455 = vmul.f32 %v370, %v452
        %456 = vst [vmem:[%s192] sm:$0xff] %v455
        %s457 = sand.u32 %s94, 1
        %s458 = scalar_lea.sflag [#allocation4], %s457
        %s459 = sand.u32 %s94, 1
        %s460 = smul.addr %s459, 8
        %s461 = scalar_lea.vmem [#allocation7], %s460
        // Predicated region
        $region37: #{tpu_custom_call.1} parent=27 // pred_check
          %p462 = pneg %p104
        $region38: #{tpu_custom_call.1} parent=27 // pred_check_branch
          %464 = sbr.rel (%p462) target = $region40
        $region39: #{tpu_custom_call.1} parent=27 // pred_region
          %s466 = ssub.s32 128, 128
          %467 = vsyncadd %s458, %s466
          %s468 = sadd.s32 %s25, %s24
          %s469 = smul.addr %s468, 128
          %s470 = scalar_lea.hbm %s2, %s469
          %s472 = sshll.u32 %s461, 4
          %s473 = int_to_ptr.vmem [resolvable:$true] %s472
          %475 = dma.vmem_to_hbm [thread:$0]  %s473, 128, %s470, %s458
        $region40: #{tpu_custom_call.1} parent=27 // pred_fallthru
          _
      $region28: #{tpu_custom_call.1} parent=5 // pred_fallthru
        _
      %p476 = scmp.le.s32.totalorder 2, %s15
      // Predicated region
      $region41: #{tpu_custom_call.1} parent=5 // pred_check
        %p477 = pneg %p476
      $region42: #{tpu_custom_call.1} parent=5 // pred_check_branch
        %479 = sbr.rel (%p477) target = $region44
      $region43: #{tpu_custom_call.1} parent=5 // pred_region
        %s480 = ssub.s32 %s15, 2
        // Predicated region
        $region45: #{tpu_custom_call.1} parent=43 // pred_check
          %p481 = pneg %p110
        $region46: #{tpu_custom_call.1} parent=43 // pred_check_branch
          %483 = sbr.rel (%p481) target = $region48
        $region47: #{tpu_custom_call.1} parent=43 // pred_region
          %s484 = sand.u32 %s95, 1
          %s485 = scalar_lea.sflag [#allocation4], %s484
          %s486 = sand.u32 %s95, 1
          %s487 = smul.addr %s486, 8
          %s488 = scalar_lea.vmem [#allocation7], %s487
          %489 = dma.done %s485, 128
        $region48: #{tpu_custom_call.1} parent=43 // pred_fallthru
          _
      $region44: #{tpu_custom_call.1} parent=5 // pred_fallthru
        _
    $region6: #{tpu_custom_call.1} parent=1 // loop_footer
      %s19 = sadd.s32 1, %s15
    $region7: #{tpu_custom_call.1} parent=1 // loop_footer_branch
      %14 = sbr.rel target = $region3
    $region8: #{tpu_custom_call.1} parent=1 // loop_exit
      _
    %490 = vsyncpa [#allocation3], 1
    %s491 = scalar_lea.sflag [#allocation3], 1
    %492 = vsyncpa %s491, 1
    %493 = vsyncpa [#allocation6], 1
    %494 = vsyncpa [#allocation4], 1
    %s495 = scalar_lea.sflag [#allocation4], 1
    %496 = vsyncpa %s495, 1

</llo_original>
